<compile_context>
chip_gen: v6e
topology: v6e:2x2x1
jax: 0.10.0
libtpu: 0.0.40
codegen_flags: <defaults>
</compile_context>

<pallas_src>
import jax
import jax.numpy as jnp
import numpy as np
from jax import lax
from jax.experimental import pallas as pl
from jax.experimental.pallas import tpu as pltpu


# ----------------------------------------------------------------------------------
# Kernel 1: presence bitmap.
#   presence[v] = 1 iff value v occurs anywhere in the (padded, flattened) codes.
#   Gridded over 128-lane code tiles; presence accumulates in a resident (V, 1) block.
# ----------------------------------------------------------------------------------
def _presence_kernel(codes_ref, presence_ref):
    @pl.when(pl.program_id(0) == 0)
    def _init():
        presence_ref[...] = jnp.zeros_like(presence_ref)

    codes = codes_ref[...]                                    # (1, TILE) int32
    v = presence_ref.shape[0]
    t = codes.shape[1]
    v_col = lax.broadcasted_iota(jnp.int32, (v, t), 0)        # value id along sublanes
    hit = (v_col == codes).astype(jnp.int32)                  # (V, TILE)
    tile_presence = jnp.max(hit, axis=1, keepdims=True)       # (V, 1)
    presence_ref[...] = jnp.maximum(presence_ref[...], tile_presence)


# ----------------------------------------------------------------------------------
# Kernel 2: finalize (count, unique) + inverse tiles.
#   Inputs:  csum (V, 1) int32 = cumsum(presence)  (rank[x] = csum[x] - 1),
#            codes tile (1, TILE) int32.
#   Outputs: inverse (1, TILE) per tile (lane dense),
#            unique  (1, V)   zero-padded beyond `count` (lane dense, written once),
#            count   (1, 1).
#   All arithmetic is int32 on the VPU; no MXU matmuls, no f32 temporaries.
# ----------------------------------------------------------------------------------
def _unique_inverse_kernel(csum_ref, codes_ref, inverse_ref, unique_ref, count_ref):
    v = csum_ref.shape[0]
    csum = csum_ref[...]                                      # (V, 1) int32, resident

    @pl.when(pl.program_id(0) == 0)
    def _finalize():
        cnt = jnp.max(csum, axis=0, keepdims=True)            # (1, 1) = #unique
        count_ref[...] = cnt
        slot = lax.broadcasted_iota(jnp.int32, (1, v), 1)     # slot id along lanes
        # unique[i] = #{x : csum[x] <= i} == i-th smallest present value.
        # TODO(synk): tile this once-per-call (V, V) int comparison over slots for
        #             very large vocabularies (v7x 64 MiB VMEM); fine for V <= ~2K.
        uniq = jnp.sum((csum <= slot).astype(jnp.int32), axis=0, keepdims=True)
        unique_ref[...] = jnp.where(slot < cnt, uniq, 0)      # zero-pad past `count`

    # inverse[t] = rank[codes[t]] = csum[codes[t]] - 1, as an integer masked reduction
    # (equality mask * csum, summed over the value axis) -> lane-dense (1, TILE) slab.
    codes = codes_ref[...]                                    # (1, TILE) int32
    t = codes.shape[1]
    v_col = lax.broadcasted_iota(jnp.int32, (v, t), 0)
    eq = v_col == codes                                       # (V, TILE) bool
    picked = jnp.where(eq, csum, 0)                           # (V, TILE) int32
    inverse_ref[...] = jnp.sum(picked, axis=0, keepdims=True) - 1


# ----------------------------------------------------------------------------------
# fast_unique_with_inverse (Pallas): values must lie in [0, vocab_size).
# Returns (unique_padded (V,), inverse (B, S), count scalar).
# ----------------------------------------------------------------------------------
def fast_unique_with_inverse(codes, vocab_size, *, tile_bs=128):
    b, s = codes.shape
    bs = b * s
    tile = max(128, (int(tile_bs) // 128) * 128)              # lane-dense 128-mult tiles
    num_tiles = pl.cdiv(bs, tile)
    bs_pad = num_tiles * tile

    codes_row = codes.reshape(1, bs).astype(jnp.int32)
    if bs_pad != bs:
        # Pad with an out-of-range code: sets no presence bit; its inverse is discarded.
        codes_row = jnp.pad(codes_row, ((0, 0), (0, bs_pad - bs)),
                            constant_values=vocab_size)

    cparams = pltpu.CompilerParams(dimension_semantics=("arbitrary",))

    presence = pl.pallas_call(
        _presence_kernel,
        out_shape=jax.ShapeDtypeStruct((vocab_size, 1), jnp.int32),
        grid=(num_tiles,),
        in_specs=[pl.BlockSpec((1, tile), lambda i: (0, i))],
        out_specs=pl.BlockSpec((vocab_size, 1), lambda i: (0, 0)),
        compiler_params=cparams,
    )(codes_row)

    # rank = cumsum(presence) - 1 (per perf review): a once-per-call length-V integer
    # scan, evaluated as a plain XLA op between the two pallas_calls.
    csum = jnp.cumsum(presence, axis=0)                       # (V, 1) int32

    inverse_row, unique_row, count = pl.pallas_call(
        _unique_inverse_kernel,
        out_shape=(
            jax.ShapeDtypeStruct((1, bs_pad), jnp.int32),     # inverse (lane dense)
            jax.ShapeDtypeStruct((1, vocab_size), jnp.int32), # unique  (lane dense)
            jax.ShapeDtypeStruct((1, 1), jnp.int32),          # count
        ),
        grid=(num_tiles,),
        in_specs=[
            pl.BlockSpec((vocab_size, 1), lambda i: (0, 0)),  # csum: resident
            pl.BlockSpec((1, tile), lambda i: (0, i)),        # codes tile
        ],
        out_specs=(
            pl.BlockSpec((1, tile), lambda i: (0, i)),
            pl.BlockSpec((1, vocab_size), lambda i: (0, 0)),
            pl.BlockSpec((1, 1), lambda i: (0, 0)),
        ),
        compiler_params=cparams,
    )(csum, codes_row)

    unique = unique_row[0]                                    # (V,), 0-padded past count
    inverse = inverse_row[0, :bs].reshape(b, s)
    return unique, inverse, count[0, 0]


# ----------------------------------------------------------------------------------
# TextCodeEmbedder.forward
# ----------------------------------------------------------------------------------
def text_code_embedder_forward(codes, mask, *, vocab_size, token_dim, tile_bs=128):
    """Forward pass. `mask` mirrors the torch signature and (as in the reference)
    is unused. forward() returns torch.zeros_like(code_embeddings[inverse]), so the
    embedder/linear/gather chain is dead code: we emit zeros of the right shape/dtype
    directly (per perf review) and only run fast_unique_with_inverse on the TPU."""
    del mask
    unique, inverse, count = fast_unique_with_inverse(codes, vocab_size, tile_bs=tile_bs)
    b, s = codes.shape
    embeddings = jnp.zeros((b, s, token_dim), jnp.float32)
    aux = {"unique": unique, "inverse": inverse, "count": count}
    return embeddings, aux


# ----------------------------------------------------------------------------------
# Self-test
# ----------------------------------------------------------------------------------
def _check(out, aux, codes, vocab_size, token_dim):
    b, s = codes.shape
    assert out.shape == (b, s, token_dim) and out.dtype == jnp.float32
    assert np.all(np.asarray(out) == 0.0)

    codes_np = np.asarray(codes).ravel()
    uq_ref, inv_ref = np.unique(codes_np, return_inverse=True)
    assert np.array_equal(np.asarray(aux["inverse"]).ravel(), inv_ref.ravel())
    n = int(np.asarray(aux["count"]))
    assert n == uq_ref.shape[0]
    uq = np.asarray(aux["unique"])
    assert np.array_equal(uq[:n], uq_ref)
    assert np.all(uq[n:] == 0)


if __name__ == "__main__":
    key = jax.random.PRNGKey(0)
    k1, k2 = jax.random.split(key)

    fwd = jax.jit(text_code_embedder_forward,
                  static_argnames=("vocab_size", "token_dim", "tile_bs"))

    # Small case (shapes implied by the module): batch=2, seq=8 codes, vocab=16, token_dim=16.
    B, S, V, D = 2, 8, 16, 16
    codes = jax.random.randint(k1, (B, S), 0, V, dtype=jnp.int32)
    mask = jnp.ones((B, S), dtype=jnp.bool_)
    out, aux = fwd(codes, mask, vocab_size=V, token_dim=D, tile_bs=128)
    jax.block_until_ready(out)
    _check(out, aux, codes, V, D)

    # Larger case: B*S = 384 -> 3 grid tiles of 128; exercises cross-tile presence
    # accumulation and the resident unique/count output blocks.
    B2, S2, V2, D2 = 4, 96, 33, 32
    codes2 = jax.random.randint(k2, (B2, S2), 0, V2, dtype=jnp.int32)
    mask2 = jnp.ones((B2, S2), dtype=jnp.bool_)
    out2, aux2 = fwd(codes2, mask2, vocab_size=V2, token_dim=D2, tile_bs=128)
    jax.block_until_ready(out2)
    _check(out2, aux2, codes2, V2, D2)

    print("KERNEL_OK")
</pallas_src>

<mosaic_0001>
module attributes {stable_mosaic.version = 11 : i64} {
  func.func @_presence_kernel(%arg0: i32, %arg1: memref<1x128xi32, #tpu.memory_space<vmem>>, %arg2: memref<16x1xi32, #tpu.memory_space<vmem>>) attributes {dimension_semantics = [#tpu.dimension_semantics<arbitrary>], iteration_bounds = array<i64: 1>, scalar_prefetch = 0 : i64, scratch_operands = 0 : i64, tpu.core_type = #tpu.core_type<tc>, window_params = [{transform_indices = @transform_0, window_bounds = array<i64: 1, 128>}, {pipeline_mode = #tpu.pipeline_mode<synchronous>, transform_indices = @transform_1, window_bounds = array<i64: 16, 1>}]} {
    %c0_i32 = arith.constant 0 : i32
    %0 = arith.cmpi eq, %arg0, %c0_i32 : i32
    %1 = arith.extui %0 : i1 to i32
    %c0_i32_0 = arith.constant 0 : i32
    %2 = arith.cmpi ne, %1, %c0_i32_0 : i32
    scf.if %2 {
      %c0_i32_6 = arith.constant 0 : i32
      %13 = vector.broadcast %c0_i32_6 : i32 to vector<16x1xi32>
      %c0_7 = arith.constant 0 : index
      %c0_8 = arith.constant 0 : index
      %14 = vector.load %arg2[%c0_7, %c0_8] : memref<16x1xi32, #tpu.memory_space<vmem>>, vector<16x1xi32>
      tpu.vector_store %arg2[%c0_7, %c0_8], %13 {strides = array<i32>} : memref<16x1xi32, #tpu.memory_space<vmem>>, vector<16x1xi32>,
    } else {
    }
    %c0 = arith.constant 0 : index
    %c0_1 = arith.constant 0 : index
    %3 = vector.load %arg1[%c0, %c0_1] : memref<1x128xi32, #tpu.memory_space<vmem>>, vector<1x128xi32>
    %4 = tpu.iota {dimensions = array<i32: 0>} : vector<16x128xi32>
    %5 = vector.broadcast %3 : vector<1x128xi32> to vector<16x128xi32>
    %6 = arith.cmpi eq, %4, %5 : vector<16x128xi32>
    %7 = arith.extui %6 : vector<16x128xi1> to vector<16x128xi32>
    %cst = arith.constant dense<-2147483648> : vector<16xi32>
    %8 = vector.multi_reduction <maxsi>, %7, %cst [1] : vector<16x128xi32> to vector<16xi32>
    %9 = vector.shape_cast %8 : vector<16xi32> to vector<16x1xi32>
    %c0_2 = arith.constant 0 : index
    %c0_3 = arith.constant 0 : index
    %10 = vector.load %arg2[%c0_2, %c0_3] : memref<16x1xi32, #tpu.memory_space<vmem>>, vector<16x1xi32>
    %11 = arith.maxsi %10, %9 : vector<16x1xi32>
    %c0_4 = arith.constant 0 : index
    %c0_5 = arith.constant 0 : index
    %12 = vector.load %arg2[%c0_4, %c0_5] : memref<16x1xi32, #tpu.memory_space<vmem>>, vector<16x1xi32>
    tpu.vector_store %arg2[%c0_4, %c0_5], %11 {strides = array<i32>} : memref<16x1xi32, #tpu.memory_space<vmem>>, vector<16x1xi32>,
    return
  }
  func.func @transform_0(%arg0: i32) -> (i32, i32) {
    %c0_i32 = arith.constant 0 : i32
    %c0_i32_0 = arith.constant 0 : i32
    return %c0_i32, %arg0 : i32, i32
  }
  func.func @transform_1(%arg0: i32) -> (i32, i32) {
    %c0_i32 = arith.constant 0 : i32
    %c0_i32_0 = arith.constant 0 : i32
    %c0_i32_1 = arith.constant 0 : i32
    return %c0_i32, %c0_i32_0 : i32, i32
  }
}

module attributes {stable_mosaic.version = 11 : i64} {
  func.func @_unique_inverse_kernel(%arg0: i32, %arg1: memref<16x1xi32, #tpu.memory_space<vmem>>, %arg2: memref<1x128xi32, #tpu.memory_space<vmem>>, %arg3: memref<1x128xi32, #tpu.memory_space<vmem>>, %arg4: memref<1x16xi32, #tpu.memory_space<vmem>>, %arg5: memref<1x1xi32, #tpu.memory_space<vmem>>) attributes {dimension_semantics = [#tpu.dimension_semantics<arbitrary>], iteration_bounds = array<i64: 1>, scalar_prefetch = 0 : i64, scratch_operands = 0 : i64, tpu.core_type = #tpu.core_type<tc>, window_params = [{pipeline_mode = #tpu.pipeline_mode<synchronous>, transform_indices = @transform_0, window_bounds = array<i64: 16, 1>}, {transform_indices = @transform_1, window_bounds = array<i64: 1, 128>}, {transform_indices = @transform_2, window_bounds = array<i64: 1, 128>}, {pipeline_mode = #tpu.pipeline_mode<synchronous>, transform_indices = @transform_3, window_bounds = array<i64: 1, 16>}, {pipeline_mode = #tpu.pipeline_mode<synchronous>, transform_indices = @transform_4, window_bounds = array<i64: 1, 1>}]} {
    %c0 = arith.constant 0 : index
    %c0_0 = arith.constant 0 : index
    %0 = vector.load %arg1[%c0, %c0_0] : memref<16x1xi32, #tpu.memory_space<vmem>>, vector<16x1xi32>
    %c0_i32 = arith.constant 0 : i32
    %1 = arith.cmpi eq, %arg0, %c0_i32 : i32
    %2 = arith.extui %1 : i1 to i32
    %c0_i32_1 = arith.constant 0 : i32
    %3 = arith.cmpi ne, %2, %c0_i32_1 : i32
    scf.if %3 {
      %cst_7 = arith.constant dense<-2147483648> : vector<1xi32>
      %17 = vector.multi_reduction <maxsi>, %0, %cst_7 [0] : vector<16x1xi32> to vector<1xi32>
      %18 = vector.shape_cast %17 : vector<1xi32> to vector<1x1xi32>
      %c0_8 = arith.constant 0 : index
      %c0_9 = arith.constant 0 : index
      %19 = vector.load %arg5[%c0_8, %c0_9] : memref<1x1xi32, #tpu.memory_space<vmem>>, vector<1x1xi32>
      tpu.vector_store %arg5[%c0_8, %c0_9], %18 {strides = array<i32>} : memref<1x1xi32, #tpu.memory_space<vmem>>, vector<1x1xi32>,
      %20 = tpu.iota {dimensions = array<i32: 1>} : vector<1x16xi32>
      %21 = vector.broadcast %0 : vector<16x1xi32> to vector<16x16xi32>
      %22 = vector.broadcast %20 : vector<1x16xi32> to vector<16x16xi32>
      %23 = arith.cmpi sle, %21, %22 : vector<16x16xi32>
      %24 = arith.extui %23 : vector<16x16xi1> to vector<16x16xi32>
      %cst_10 = arith.constant dense<0> : vector<16xi32>
      %25 = vector.multi_reduction <add>, %24, %cst_10 [0] : vector<16x16xi32> to vector<16xi32>
      %26 = vector.shape_cast %25 : vector<16xi32> to vector<1x16xi32>
      %27 = vector.broadcast %18 : vector<1x1xi32> to vector<1x16xi32>
      %28 = arith.cmpi slt, %20, %27 : vector<1x16xi32>
      %c0_i32_11 = arith.constant 0 : i32
      %29 = vector.broadcast %c0_i32_11 : i32 to vector<1x16xi32>
      %30 = arith.select %28, %26, %29 : vector<1x16xi1>, vector<1x16xi32>
      %c0_12 = arith.constant 0 : index
      %c0_13 = arith.constant 0 : index
      %31 = vector.load %arg4[%c0_12, %c0_13] : memref<1x16xi32, #tpu.memory_space<vmem>>, vector<1x16xi32>
      tpu.vector_store %arg4[%c0_12, %c0_13], %30 {strides = array<i32>} : memref<1x16xi32, #tpu.memory_space<vmem>>, vector<1x16xi32>,
    } else {
    }
    %c0_2 = arith.constant 0 : index
    %c0_3 = arith.constant 0 : index
    %4 = vector.load %arg2[%c0_2, %c0_3] : memref<1x128xi32, #tpu.memory_space<vmem>>, vector<1x128xi32>
    %5 = tpu.iota {dimensions = array<i32: 0>} : vector<16x128xi32>
    %6 = vector.broadcast %4 : vector<1x128xi32> to vector<16x128xi32>
    %7 = arith.cmpi eq, %5, %6 : vector<16x128xi32>
    %c0_i32_4 = arith.constant 0 : i32
    %8 = vector.shape_cast %0 : vector<16x1xi32> to vector<16x1xi32>
    %9 = vector.broadcast %8 : vector<16x1xi32> to vector<16x128xi32>
    %10 = vector.broadcast %c0_i32_4 : i32 to vector<16x128xi32>
    %11 = arith.select %7, %9, %10 : vector<16x128xi1>, vector<16x128xi32>
    %cst = arith.constant dense<0> : vector<128xi32>
    %12 = vector.multi_reduction <add>, %11, %cst [0] : vector<16x128xi32> to vector<128xi32>
    %13 = vector.shape_cast %12 : vector<128xi32> to vector<1x128xi32>
    %c1_i32 = arith.constant 1 : i32
    %14 = vector.broadcast %c1_i32 : i32 to vector<1x128xi32>
    %15 = arith.subi %13, %14 : vector<1x128xi32>
    %c0_5 = arith.constant 0 : index
    %c0_6 = arith.constant 0 : index
    %16 = vector.load %arg3[%c0_5, %c0_6] : memref<1x128xi32, #tpu.memory_space<vmem>>, vector<1x128xi32>
    tpu.vector_store %arg3[%c0_5, %c0_6], %15 {strides = array<i32>} : memref<1x128xi32, #tpu.memory_space<vmem>>, vector<1x128xi32>,
    return
  }
  func.func @transform_0(%arg0: i32) -> (i32, i32) {
    %c0_i32 = arith.constant 0 : i32
    %c0_i32_0 = arith.constant 0 : i32
    %c0_i32_1 = arith.constant 0 : i32
    return %c0_i32, %c0_i32_0 : i32, i32
  }
  func.func @transform_1(%arg0: i32) -> (i32, i32) {
    %c0_i32 = arith.constant 0 : i32
    %c0_i32_0 = arith.constant 0 : i32
    return %c0_i32, %arg0 : i32, i32
  }
  func.func @transform_2(%arg0: i32) -> (i32, i32) {
    %c0_i32 = arith.constant 0 : i32
    %c0_i32_0 = arith.constant 0 : i32
    return %c0_i32, %arg0 : i32, i32
  }
  func.func @transform_3(%arg0: i32) -> (i32, i32) {
    %c0_i32 = arith.constant 0 : i32
    %c0_i32_0 = arith.constant 0 : i32
    %c0_i32_1 = arith.constant 0 : i32
    return %c0_i32, %c0_i32_0 : i32, i32
  }
  func.func @transform_4(%arg0: i32) -> (i32, i32) {
    %c0_i32 = arith.constant 0 : i32
    %c0_i32_0 = arith.constant 0 : i32
    %c0_i32_1 = arith.constant 0 : i32
    return %c0_i32, %c0_i32_0 : i32, i32
  }
}

</mosaic_0001>

<llo_original>
// kernel: squeeze.4
$region0: #{squeeze.4}
  %s0 = inlined_call_operand.vmem [shape: s32[16], index: 0, kind: input, shape index: {}]
  %s1 = inlined_call_operand.hbm [shape: s32[2,8], index: 1, kind: output, shape index: {}]
  $region1: #{squeeze.4} parent=0
    #allocation0 [shape = 'u8[1024]{0}', space=vmem, size = 0x400, scoped, tag = 'operand span for operand 1']
    #allocation1 [shape = 's32[1]{0}', space=sflag, size = 0x4, scoped, tag = 'scoped memory for squeeze.4']
    #allocation2 [shape = 'u8[4096]{0}', space=vmem, size = 0x1000, scoped, tag = 'scoped mem for output reshape']
    #allocation3 [shape = 'u8[4096]{0}', space=vmem, size = 0x1000, scoped, tag = 'scoped mem for input reshape']
    %2 = vsyncpa [#allocation1], 0
    %s4 = sshll.u32 1, 1
    %s5 = ssub.s32 %s4, 1
    %v6 = vld [vmem:[%s0] sm:%s5]
    %7 = vst [vmem:[#allocation3] sm:%s5] %v6
    %v8 = vld [vmem:[#allocation3] sm:$0x1]
    %vm9 = vcmask 64512
    %10 = vst.msk [vmem:[#allocation2] sm:$0x1] %vm9, %v8
    %v11 = vld [vmem:[#allocation3] sm:$0x1]
    %12 = vrot.lane.b32.xlu0 %v11, 120
    %v13 = vpop.permute.xlu0 %12
    %vm14 = vcmask 64512
    %s15 = scalar_lea.vmem [#allocation2], 1
    %16 = vst.msk [vmem:[%s15] sm:$0x1] %vm14, %v13
    %s18 = sshll.u32 1, 2
    %s19 = ssub.s32 %s18, 1
    %v21 = vld [vmem:[#allocation2] sm:%s19]
    %s22 = sshll.u32 1, 2
    %s23 = ssub.s32 %s22, 1
    %24 = vst [vmem:[#allocation0] sm:%s23] %v21
    %s26 = ssub.s32 32, 32
    %27 = vsyncadd [#allocation1], %s26
    %s29 = sshll.u32 [#allocation0], 4
    %s30 = int_to_ptr.vmem [resolvable:$true] %s29
    %32 = dma.vmem_to_hbm [thread:$0]  %s30, 32, %s1, [#allocation1]
    %33 = dma.done [#allocation1], 32
    %34 = vsyncpa [#allocation1], 1

// kernel: text_code_embedder_forward.2
$region0: #{text_code_embedder_forward.2}
  #allocation0 [shape = 'u32[]', space=smem, size = 0x4, offset = 0x4, fixed_abs, tag = 'smem constant byte address 0x4 - core index']
  #allocation1 [shape = 'u32[144,128]{1,0:T(1,128)}', space=vmem, size = 0x12000, scoped, tag = 'internal scratch']
  %s0 = inlined_call_operand.vmem [shape: s32[1,128], index: 0, kind: input, shape index: {}]
  %s1 = inlined_call_operand.vmem [shape: s32[16,1], index: 1, kind: output, shape index: {}]
  %s2 = sld [smem:[#allocation0]]
  $region18: #{text_code_embedder_forward.2} parent=0
    _
  %s4 = ssub.s32 1, %s2
  %s5 = scalar_select 0, %s4, %s2
  // Predicated region
  $region2: #{text_code_embedder_forward.2} parent=0 // pred_check
    _
  $region3: #{text_code_embedder_forward.2} parent=0 // pred_check_branch
    %7 = sbr.rel (0) target = $region5
  $region4: #{text_code_embedder_forward.2} parent=0 // pred_region
    _
  $region5: #{text_code_embedder_forward.2} parent=0 // pred_fallthru
    _
  %p8 = scmp.eq.s32.totalorder 0, 0
  // Predicated region
  $region6: #{text_code_embedder_forward.2} parent=0 // pred_check
    %p9 = pneg %p8
  $region7: #{text_code_embedder_forward.2} parent=0 // pred_check_branch
    %11 = sbr.rel (%p9) target = $region9
  $region8: #{text_code_embedder_forward.2} parent=0 // pred_region
    %vm12 = vcmask 7168
    %13 = vst.msk [vmem:[%s1] sm:$0xff] %vm12, 0
    %14 = vst.msk [vmem:[%s1 + $0x8] sm:$0xff] %vm12, 0
  $region9: #{text_code_embedder_forward.2} parent=0 // pred_fallthru
    _
  %v15 = vld [vmem:[%s0] sm:$0x1]
  %v16 = vlaneseq
  %v17 = vshrl.u32 %v16, 7
  %v18 = vadd.s32 %v17, 8
  %v19 = vlaneseq
  %v20 = vshrl.u32 %v19, 7
  %v21 = vsub.s32 0, %v20
  %v22 = vrot.slane %v15, %v21
  %vm23 = vcmp.eq.s32.totalorder %v17, %v22
  %vm24 = vcmp.eq.s32.totalorder %v18, %v22
  %v25 = vsel %vm23, 1, 0
  %v26 = vsel %vm24, 1, 0
  %v27 = vand.u32 %v25, 65535
  %v28 = vshra.s32 %v25, 16
  %v29 = vcvt.s32.f32 %v27
  %v30 = vcvt.s32.f32 %v28
  %31 = vmax.xlane.f32.xlu0 %v30
  %v32 = vpop.xlane.xlu0 %31
  %vm33 = vcmp.eq.f32.partialorder %v30, %v32
  %v34 = vsel %vm33, %v29, -inf
  %35 = vmax.xlane.f32.xlu0 %v34
  %v36 = vpop.xlane.xlu0 %35
  %v37 = vcvt.f32.s32 %v36
  %v38 = vcvt.f32.s32 %v32
  %v39 = vshll.u32 %v38, 16
  %v40 = vadd.s32 %v39, %v37
  %v41 = vand.u32 %v26, 65535
  %v42 = vshra.s32 %v26, 16
  %v43 = vcvt.s32.f32 %v41
  %v44 = vcvt.s32.f32 %v42
  %45 = vmax.xlane.f32.xlu0 %v44
  %v46 = vpop.xlane.xlu0 %45
  %vm47 = vcmp.eq.f32.partialorder %v44, %v46
  %v48 = vsel %vm47, %v43, -inf
  %49 = vmax.xlane.f32.xlu0 %v48
  %v50 = vpop.xlane.xlu0 %49
  %v51 = vcvt.f32.s32 %v50
  %v52 = vcvt.f32.s32 %v46
  %v53 = vshll.u32 %v52, 16
  %v54 = vadd.s32 %v53, %v51
  %v55 = vld [vmem:[%s1] sm:$0xff]
  %v56 = vld [vmem:[%s1 + $0x8] sm:$0xff]
  %vm57 = vcmp.gt.s32.totalorder %v55, %v40
  %v58 = vsel %vm57, %v55, %v40
  %vm59 = vcmp.gt.s32.totalorder %v56, %v54
  %v60 = vsel %vm59, %v56, %v54
  %vm61 = vcmask 7168
  %62 = vst.msk [vmem:[%s1] sm:$0xff] %vm61, %v58
  %63 = vst.msk [vmem:[%s1 + $0x8] sm:$0xff] %vm61, %v60
  // Predicated region
  $region10: #{text_code_embedder_forward.2} parent=0 // pred_check
    _
  $region11: #{text_code_embedder_forward.2} parent=0 // pred_check_branch
    %65 = sbr.rel (0) target = $region13
  $region12: #{text_code_embedder_forward.2} parent=0 // pred_region
    _
  $region13: #{text_code_embedder_forward.2} parent=0 // pred_fallthru
    _
  // Predicated region
  $region14: #{text_code_embedder_forward.2} parent=0 // pred_check
    _
  $region15: #{text_code_embedder_forward.2} parent=0 // pred_check_branch
    %67 = sbr.rel (0) target = $region17
  $region16: #{text_code_embedder_forward.2} parent=0 // pred_region
    _
  $region17: #{text_code_embedder_forward.2} parent=0 // pred_fallthru
    _

// kernel: text_code_embedder_forward.3
$region0: #{text_code_embedder_forward.3}
  #allocation0 [shape = 'u32[]', space=smem, size = 0x4, offset = 0x4, fixed_abs, tag = 'smem constant byte address 0x4 - core index']
  #allocation1 [shape = 'u32[144,128]{1,0:T(1,128)}', space=vmem, size = 0x12000, scoped, tag = 'internal scratch']
  %s0 = inlined_call_operand.vmem [shape: s32[16,1], index: 0, kind: input, shape index: {}]
  %s1 = inlined_call_operand.vmem [shape: s32[1,128], index: 1, kind: input, shape index: {}]
  %s2 = inlined_call_operand.vmem [shape: s32[1,128], index: 2, kind: output, shape index: {0}]
  %s3 = inlined_call_operand.hbm [shape: s32[1,16], index: 3, kind: output, shape index: {1}]
  %s4 = inlined_call_operand.hbm [shape: s32[1,1], index: 4, kind: output, shape index: {2}]
  %5 = xla_tuple %s2, %s3, %s4
  %s6 = sld [smem:[#allocation0]]
  $region38: #{text_code_embedder_forward.3} parent=0
    _
  %s8 = ssub.s32 1, %s6
  %s9 = scalar_select 0, %s8, %s6
  $region1: #{text_code_embedder_forward.3} parent=0
    #allocation2 [shape = 'u8[512]{0}', space=vmem, size = 0x400, scoped, tag = 'output window, operand 1, single buffered']
    #allocation3 [shape = 's32[1]{0}', space=sflag, size = 0x4, scoped, tag = 'scoped memory for text_code_embedder_forward.3']
    #allocation4 [shape = 'u8[512]{0}', space=vmem, size = 0x400, scoped, tag = 'output window, operand 2, single buffered']
    #allocation5 [shape = 's32[1]{0}', space=sflag, size = 0x4, scoped, tag = 'scoped memory for text_code_embedder_forward.3']
    %10 = vsyncpa [#allocation3], 0
    %11 = vsyncpa [#allocation5], 0
    // Predicated region
    $region2: #{text_code_embedder_forward.3} parent=1 // pred_check
      _
    $region3: #{text_code_embedder_forward.3} parent=1 // pred_check_branch
      %13 = sbr.rel (0) target = $region5
    $region4: #{text_code_embedder_forward.3} parent=1 // pred_region
      _
    $region5: #{text_code_embedder_forward.3} parent=1 // pred_fallthru
      _
    // Predicated region
    $region6: #{text_code_embedder_forward.3} parent=1 // pred_check
      _
    $region7: #{text_code_embedder_forward.3} parent=1 // pred_check_branch
      %15 = sbr.rel (0) target = $region9
    $region8: #{text_code_embedder_forward.3} parent=1 // pred_region
      _
    $region9: #{text_code_embedder_forward.3} parent=1 // pred_fallthru
      _
    %v16 = vld [vmem:[%s0] sm:$0xff]
    %v17 = vld [vmem:[%s0 + $0x8] sm:$0xff]
    %p18 = scmp.eq.s32.totalorder 0, 0
    // Predicated region
    $region10: #{text_code_embedder_forward.3} parent=1 // pred_check
      %p19 = pneg %p18
    $region11: #{text_code_embedder_forward.3} parent=1 // pred_check_branch
      %21 = sbr.rel (%p19) target = $region13
    $region12: #{text_code_embedder_forward.3} parent=1 // pred_region
      %vm22 = vcmask 7168
      %v23 = vsel %vm22, %v16, 2147483648
      %v24 = vsel %vm22, %v17, 2147483648
      %vm25 = vcmp.gt.s32.totalorder %v23, %v24
      %v26 = vsel %vm25, %v23, %v24
      %v27 = vrot.slane %v26, 4
      %vm28 = vcmp.gt.s32.totalorder %v26, %v27
      %v29 = vsel %vm28, %v26, %v27
      %v30 = vrot.slane %v29, 2
      %vm31 = vcmp.gt.s32.totalorder %v29, %v30
      %v32 = vsel %vm31, %v29, %v30
      %v33 = vrot.slane %v32, 1
      %vm34 = vcmp.gt.s32.totalorder %v32, %v33
      %v35 = vsel %vm34, %v32, %v33
      %vm36 = vcmask 0
      %37 = vst.msk [vmem:[#allocation4] sm:$0x1] %vm36, %v35
      %v38 = vlaneseq
      %v39 = vand.u32 %v38, 127
      %40 = vset.pattern.permute.xlu0 0
      %41 = vperm.xlu0 %40, %v16
      %v42 = vpop.permute.xlu0 %41
      %43 = vset.pattern.permute.xlu0 0
      %44 = vperm.xlu0 %43, %v17
      %v45 = vpop.permute.xlu0 %44
      %vm46 = vcmp.le.s32.totalorder %v42, %v39
      %vm47 = vcmp.le.s32.totalorder %v45, %v39
      %v48 = vsel %vm46, 1, 0
      %v49 = vsel %vm47, 1, 0
      %vm50 = vcmask 130048
      %v51 = vsel %vm50, %v48, 0
      %v52 = vsel %vm50, %v49, 0
      %v53 = vadd.s32 %v51, %v52
      %v54 = vrot.slane %v53, 4
      %v55 = vadd.s32 %v53, %v54
      %v56 = vrot.slane %v55, 2
      %v57 = vadd.s32 %v55, %v56
      %v58 = vrot.slane %v57, 1
      %v59 = vadd.s32 %v57, %v58
      %60 = vset.pattern.permute.xlu0 0
      %61 = vperm.xlu0 %60, %v35
      %v62 = vpop.permute.xlu0 %61
      %vm63 = vcmp.lt.s32.totalorder %v39, %v62
      %v64 = vsel %vm63, %v59, 0
      %vm65 = vcmask 122880
      %66 = vst.msk [vmem:[#allocation2] sm:$0x1] %vm65, %v64
    $region13: #{text_code_embedder_forward.3} parent=1 // pred_fallthru
      _
    %v67 = vld [vmem:[%s1] sm:$0x1]
    %v68 = vlaneseq
    %v69 = vshrl.u32 %v68, 7
    %v70 = vadd.s32 %v69, 8
    %v71 = vlaneseq
    %v72 = vshrl.u32 %v71, 7
    %v73 = vsub.s32 0, %v72
    %v74 = vrot.slane %v67, %v73
    %vm75 = vcmp.eq.s32.totalorder %v69, %v74
    %vm76 = vcmp.eq.s32.totalorder %v70, %v74
    %77 = vset.pattern.permute.xlu0 0
    %78 = vperm.xlu0 %77, %v16
    %v79 = vpop.permute.xlu0 %78
    %80 = vset.pattern.permute.xlu0 0
    %81 = vperm.xlu0 %80, %v17
    %v82 = vpop.permute.xlu0 %81
    %v83 = vsel %vm75, %v79, 0
    %v84 = vsel %vm76, %v82, 0
    %v85 = vadd.s32 %v83, %v84
    %v86 = vrot.slane %v85, 4
    %v87 = vadd.s32 %v85, %v86
    %v88 = vrot.slane %v87, 2
    %v89 = vadd.s32 %v87, %v88
    %v90 = vrot.slane %v89, 1
    %v91 = vadd.s32 %v89, %v90
    %v92 = vsub.s32 %v91, 1
    %93 = vst [vmem:[%s2] sm:$0x1] %v92
    // Predicated region
    $region14: #{text_code_embedder_forward.3} parent=1 // pred_check
      _
    $region15: #{text_code_embedder_forward.3} parent=1 // pred_check_branch
      %95 = sbr.rel (0) target = $region17
    $region16: #{text_code_embedder_forward.3} parent=1 // pred_region
      _
    $region17: #{text_code_embedder_forward.3} parent=1 // pred_fallthru
      _
    // Predicated region
    $region18: #{text_code_embedder_forward.3} parent=1 // pred_check
      _
    $region19: #{text_code_embedder_forward.3} parent=1 // pred_check_branch
      %97 = sbr.rel (0) target = $region21
    $region20: #{text_code_embedder_forward.3} parent=1 // pred_region
      %s99 = ssub.s32 16, 16
      %100 = vsyncadd [#allocation3], %s99
      %s102 = sshll.u32 [#allocation2], 4
      %s103 = int_to_ptr.vmem [resolvable:$true] %s102
      %105 = dma.vmem_to_hbm [thread:$0]  %s103, 16, %s3, [#allocation3]
    $region21: #{text_code_embedder_forward.3} parent=1 // pred_fallthru
      _
    // Predicated region
    $region22: #{text_code_embedder_forward.3} parent=1 // pred_check
      _
    $region23: #{text_code_embedder_forward.3} parent=1 // pred_check_branch
      %107 = sbr.rel (0) target = $region25
    $region24: #{text_code_embedder_forward.3} parent=1 // pred_region
      %s109 = ssub.s32 16, 16
      %110 = vsyncadd [#allocation5], %s109
      %s112 = sshll.u32 [#allocation4], 4
      %s113 = int_to_ptr.vmem [resolvable:$true] %s112
      %115 = dma.vmem_to_hbm [thread:$0]  %s113, 16, %s4, [#allocation5]
    $region25: #{text_code_embedder_forward.3} parent=1 // pred_fallthru
      _
    // Predicated region
    $region26: #{text_code_embedder_forward.3} parent=1 // pred_check
      _
    $region27: #{text_code_embedder_forward.3} parent=1 // pred_check_branch
      %117 = sbr.rel (0) target = $region29
    $region28: #{text_code_embedder_forward.3} parent=1 // pred_region
      _
    $region29: #{text_code_embedder_forward.3} parent=1 // pred_fallthru
      _
    // Predicated region
    $region30: #{text_code_embedder_forward.3} parent=1 // pred_check
      _
    $region31: #{text_code_embedder_forward.3} parent=1 // pred_check_branch
      %119 = sbr.rel (0) target = $region33
    $region32: #{text_code_embedder_forward.3} parent=1 // pred_region
      %120 = dma.done [#allocation3], 16
    $region33: #{text_code_embedder_forward.3} parent=1 // pred_fallthru
      _
    // Predicated region
    $region34: #{text_code_embedder_forward.3} parent=1 // pred_check
      _
    $region35: #{text_code_embedder_forward.3} parent=1 // pred_check_branch
      %122 = sbr.rel (0) target = $region37
    $region36: #{text_code_embedder_forward.3} parent=1 // pred_region
      %123 = dma.done [#allocation5], 16
    $region37: #{text_code_embedder_forward.3} parent=1 // pred_fallthru
      _
    %124 = vsyncpa [#allocation3], 1
    %125 = vsyncpa [#allocation5], 1

</llo_original>
